<compile_context>
chip_gen: v7x
topology: tpu7x:2x2x1
jax: 0.10.0
libtpu: 0.0.40
codegen_flags: <defaults>
</compile_context>

<pallas_src>
import functools

import jax
import jax.numpy as jnp
from jax.experimental import pallas as pl
from jax.experimental.pallas import tpu as pltpu


_EPS = 1e-12
_EPS2 = _EPS * _EPS          # compare on the squared norm -> preserves max(||x||, eps)
_LANE = 128
_NEG_INF = -1e30

_TB_CAP = 512                # query rows per grid step (multiple of 256)
_TN_CAP = 2048               # negative columns per grid step (multiple of 256)


# ----------------------------------------------------------------------------
# Tiling / padding helpers
# ----------------------------------------------------------------------------
def _round_up(x, m):
    return ((x + m - 1) // m) * m


def _tile_and_pad(n, cap, prefer=256, align=16):
    """Pick (tile, padded_n) with padded_n % tile == 0.  Never returns an
    unbounded full-dimension block for large n; pads instead."""
    if n <= cap:
        t = _round_up(n, align)
        return t, t
    step = prefer if cap >= prefer else align
    best_t, best_pad = None, None
    for t in range(step, cap + 1, step):
        padded = _round_up(n, t)
        if best_pad is None or padded < best_pad or (padded == best_pad and t > best_t):
            best_t, best_pad = t, padded
    if best_t is None:                     # cap smaller than any aligned tile
        best_t = align
        best_pad = _round_up(n, align)
    return best_t, best_pad


def _pad2d(x, rows, cols):
    r, c = x.shape
    if r == rows and c == cols:
        return x
    return jnp.pad(x, ((0, rows - r), (0, cols - c)))


def _params(semantics, tile_bytes):
    # Double-buffered per-step working set + headroom, clamped to a range that is
    # safe on every generation (v7x has only 64 MiB physical VMEM).
    vlim = int(min(max(2 * tile_bytes + (8 << 20), 32 << 20), 48 << 20))
    return pltpu.CompilerParams(dimension_semantics=semantics, vmem_limit_bytes=vlim)


# ----------------------------------------------------------------------------
# Prep kernels (multi-pass regime only)
# ----------------------------------------------------------------------------
def _prep_q_kernel(q_ref, p_ref, qn_ref, pos_ref, *, inv_temp):
    # Unpaired path: normalized positives are only needed for the per-row positive
    # logit, so they are NOT written back to HBM (saves a B x D bf16 vst stream).
    q = q_ref[...].astype(jnp.float32)
    p = p_ref[...].astype(jnp.float32)
    qsc = jax.lax.rsqrt(jnp.maximum(jnp.sum(q * q, axis=-1, keepdims=True), _EPS2))
    psc = jax.lax.rsqrt(jnp.maximum(jnp.sum(p * p, axis=-1, keepdims=True), _EPS2))
    qn = q * (qsc * jnp.float32(inv_temp))       # 1/temperature folded in once
    pn = p * psc
    pos_ref[...] = jnp.sum(qn * pn, axis=-1, keepdims=True)
    qn_ref[...] = qn.astype(qn_ref.dtype)


def _prep_qp_kernel(q_ref, p_ref, qn_ref, pn_ref, pos_ref, *, inv_temp):
    # In-batch path: normalized positives double as the negative matrix.
    q = q_ref[...].astype(jnp.float32)
    p = p_ref[...].astype(jnp.float32)
    qsc = jax.lax.rsqrt(jnp.maximum(jnp.sum(q * q, axis=-1, keepdims=True), _EPS2))
    psc = jax.lax.rsqrt(jnp.maximum(jnp.sum(p * p, axis=-1, keepdims=True), _EPS2))
    qn = (q * (qsc * jnp.float32(inv_temp))).astype(jnp.bfloat16)
    pn = (p * psc).astype(jnp.bfloat16)
    # pos from the bf16-rounded operands so it matches the diagonal logit produced
    # by the bf16 MXU matmul in the main kernel.
    pos_ref[...] = jnp.sum(qn.astype(jnp.float32) * pn.astype(jnp.float32),
                           axis=-1, keepdims=True)
    qn_ref[...] = qn
    pn_ref[...] = pn


def _normalize_rows_kernel(x_ref, o_ref):
    x = x_ref[...].astype(jnp.float32)
    s = jax.lax.rsqrt(jnp.maximum(jnp.sum(x * x, axis=-1, keepdims=True), _EPS2))
    o_ref[...] = (x * s).astype(o_ref.dtype)


def _prepare_q(q, p, inv_t, tb):
    b_pad, d_pad = q.shape
    kernel = functools.partial(_prep_q_kernel, inv_temp=inv_t)
    tile_b = 2 * tb * d_pad * 4 + tb * d_pad * 2 + tb * 4
    return pl.pallas_call(
        kernel, grid=(b_pad // tb,),
        in_specs=[pl.BlockSpec((tb, d_pad), lambda i: (i, 0)),
                  pl.BlockSpec((tb, d_pad), lambda i: (i, 0))],
        out_specs=[pl.BlockSpec((tb, d_pad), lambda i: (i, 0)),
                   pl.BlockSpec((tb, 1), lambda i: (i, 0))],
        out_shape=[jax.ShapeDtypeStruct((b_pad, d_pad), jnp.bfloat16),
                   jax.ShapeDtypeStruct((b_pad, 1), jnp.float32)],
        compiler_params=_params(("parallel",), tile_b),
    )(q, p)


def _prepare_qp(q, p, inv_t, tb):
    b_pad, d_pad = q.shape
    kernel = functools.partial(_prep_qp_kernel, inv_temp=inv_t)
    tile_b = 2 * tb * d_pad * 4 + 2 * tb * d_pad * 2 + tb * 4
    return pl.pallas_call(
        kernel, grid=(b_pad // tb,),
        in_specs=[pl.BlockSpec((tb, d_pad), lambda i: (i, 0)),
                  pl.BlockSpec((tb, d_pad), lambda i: (i, 0))],
        out_specs=[pl.BlockSpec((tb, d_pad), lambda i: (i, 0)),
                   pl.BlockSpec((tb, d_pad), lambda i: (i, 0)),
                   pl.BlockSpec((tb, 1), lambda i: (i, 0))],
        out_shape=[jax.ShapeDtypeStruct((b_pad, d_pad), jnp.bfloat16),
                   jax.ShapeDtypeStruct((b_pad, d_pad), jnp.bfloat16),
                   jax.ShapeDtypeStruct((b_pad, 1), jnp.float32)],
        compiler_params=_params(("parallel",), tile_b),
    )(q, p)


def _normalize_rows_bf16(x, tr):
    n_pad, d_pad = x.shape
    tile_b = tr * d_pad * (4 + 2)
    return pl.pallas_call(
        _normalize_rows_kernel, grid=(n_pad // tr,),
        in_specs=[pl.BlockSpec((tr, d_pad), lambda i: (i, 0))],
        out_specs=pl.BlockSpec((tr, d_pad), lambda i: (i, 0)),
        out_shape=jax.ShapeDtypeStruct((n_pad, d_pad), jnp.bfloat16),
        compiler_params=_params(("parallel",), tile_b),
    )(x)


# ----------------------------------------------------------------------------
# Main kernel (multi-pass): pre-normalized bf16 queries x pre-transposed [D, N]
# bf16 negatives, flash-style online logsumexp over the second grid axis.
# ----------------------------------------------------------------------------
def _stream_lse_kernel(qn_ref, pos_ref, negT_ref, loss_ref, m_ref, s_ref,
                       *, seed_with_pos, n_valid, n_pad, tn):
    j = pl.program_id(1)

    @pl.when(j == 0)
    def _():
        if seed_with_pos:                     # unpaired: positive is class 0
            m_ref[...] = pos_ref[...]
            s_ref[...] = jnp.ones_like(s_ref)
        else:                                 # in-batch: positive is the diagonal
            m_ref[...] = jnp.full_like(m_ref, _NEG_INF)
            s_ref[...] = jnp.zeros_like(s_ref)

    # [TB, TN] logits: RHS is pre-transposed [D, TN] so the contraction is on its
    # sublane axis -> no per-tile relayout before the MXU; f32 accumulation.
    logits = jax.lax.dot_general(
        qn_ref[...], negT_ref[...],
        dimension_numbers=(((1,), (0,)), ((), ())),
        preferred_element_type=jnp.float32)

    if n_pad > n_valid:                       # compile-time: only if padding exists
        col = jax.lax.broadcasted_iota(jnp.int32, logits.shape, 1) + j * tn
        logits = jnp.where(col < n_valid, logits, _NEG_INF)

    m_prev = m_ref[...]
    m_new = jnp.maximum(m_prev, jnp.max(logits, axis=-1, keepdims=True))
    s_ref[...] = (s_ref[...] * jnp.exp(m_prev - m_new)
                  + jnp.sum(jnp.exp(logits - m_new), axis=-1, keepdims=True))
    m_ref[...] = m_new

    @pl.when(j == pl.num_programs(1) - 1)
    def _():
        loss_ref[...] = m_ref[...] + jnp.log(s_ref[...]) - pos_ref[...]


def _run_stream(qn, pos, negT, *, seed_with_pos, n_valid, tb, tn):
    b_pad, d_pad = qn.shape
    n_pad = negT.shape[1]
    kernel = functools.partial(_stream_lse_kernel, seed_with_pos=seed_with_pos,
                               n_valid=n_valid, n_pad=n_pad, tn=tn)
    tile_b = tb * d_pad * 2 + d_pad * tn * 2 + tb * tn * 4
    return pl.pallas_call(
        kernel, grid=(b_pad // tb, n_pad // tn),
        in_specs=[pl.BlockSpec((tb, d_pad), lambda i, j: (i, 0)),
                  pl.BlockSpec((tb, 1), lambda i, j: (i, 0)),
                  pl.BlockSpec((d_pad, tn), lambda i, j: (0, j))],
        out_specs=pl.BlockSpec((tb, 1), lambda i, j: (i, 0)),
        out_shape=jax.ShapeDtypeStruct((b_pad, 1), jnp.float32),
        scratch_shapes=[pltpu.VMEM((tb, 1), jnp.float32),    # running max
                        pltpu.VMEM((tb, 1), jnp.float32)],   # running sumexp
        compiler_params=_params(("parallel", "arbitrary"), tile_b),
    )(qn, pos, negT)


# ----------------------------------------------------------------------------
# Fused single-pass kernels (B fits one query tile): normalization + online LSE
# in one launch -> raw negatives read from HBM exactly once.
# ----------------------------------------------------------------------------
def _fused_unpaired_kernel(q_ref, p_ref, neg_ref, loss_ref,
                           qn_s, pos_s, m_ref, s_ref,
                           *, inv_temp, n_valid, n_pad, tn):
    j = pl.program_id(0)

    @pl.when(j == 0)
    def _():
        q = q_ref[...].astype(jnp.float32)
        p = p_ref[...].astype(jnp.float32)
        qsc = jax.lax.rsqrt(jnp.maximum(jnp.sum(q * q, axis=-1, keepdims=True), _EPS2))
        psc = jax.lax.rsqrt(jnp.maximum(jnp.sum(p * p, axis=-1, keepdims=True), _EPS2))
        qn = q * (qsc * jnp.float32(inv_temp))
        pn = p * psc
        pos = jnp.sum(qn * pn, axis=-1, keepdims=True)
        qn_s[...] = qn.astype(qn_s.dtype)
        pos_s[...] = pos
        m_ref[...] = pos                       # seed LSE with the positive logit
        s_ref[...] = jnp.ones_like(s_ref)

    neg = neg_ref[...].astype(jnp.float32)
    nsc = jax.lax.rsqrt(jnp.maximum(jnp.sum(neg * neg, axis=-1, keepdims=True), _EPS2))
    negn = (neg * nsc).astype(jnp.bfloat16)

    logits = jax.lax.dot_general(
        qn_s[...], negn,
        dimension_numbers=(((1,), (1,)), ((), ())),
        preferred_element_type=jnp.float32)

    if n_pad > n_valid:
        col = jax.lax.broadcasted_iota(jnp.int32, logits.shape, 1) + j * tn
        logits = jnp.where(col < n_valid, logits, _NEG_INF)

    m_prev = m_ref[...]
    m_new = jnp.maximum(m_prev, jnp.max(logits, axis=-1, keepdims=True))
    s_ref[...] = (s_ref[...] * jnp.exp(m_prev - m_new)
                  + jnp.sum(jnp.exp(logits - m_new), axis=-1, keepdims=True))
    m_ref[...] = m_new

    @pl.when(j == pl.num_programs(0) - 1)
    def _():
        loss_ref[...] = m_ref[...] + jnp.log(s_ref[...]) - pos_s[...]


def _run_fused_unpaired(q, p, neg, inv_t, n_valid, tn):
    b_pad, d_pad = q.shape
    n_pad = neg.shape[0]
    kernel = functools.partial(_fused_unpaired_kernel, inv_temp=inv_t,
                               n_valid=n_valid, n_pad=n_pad, tn=tn)
    tile_b = (2 * b_pad * d_pad * 4 + tn * d_pad * 4
              + b_pad * d_pad * 2 + b_pad * tn * 4)
    return pl.pallas_call(
        kernel, grid=(n_pad // tn,),
        in_specs=[pl.BlockSpec((b_pad, d_pad), lambda j: (0, 0)),
                  pl.BlockSpec((b_pad, d_pad), lambda j: (0, 0)),
                  pl.BlockSpec((tn, d_pad), lambda j: (j, 0))],
        out_specs=pl.BlockSpec((b_pad, 1), lambda j: (0, 0)),
        out_shape=jax.ShapeDtypeStruct((b_pad, 1), jnp.float32),
        scratch_shapes=[pltpu.VMEM((b_pad, d_pad), jnp.bfloat16),  # qn (1/temp folded)
                        pltpu.VMEM((b_pad, 1), jnp.float32),       # pos
                        pltpu.VMEM((b_pad, 1), jnp.float32),       # running max
                        pltpu.VMEM((b_pad, 1), jnp.float32)],      # running sumexp
        compiler_params=_params(("arbitrary",), tile_b),
    )(q, p, neg)


def _fused_inbatch_kernel(q_ref, p_ref, loss_ref, *, inv_temp, n_valid, n_pad):
    q = q_ref[...].astype(jnp.float32)
    p = p_ref[...].astype(jnp.float32)
    qsc = jax.lax.rsqrt(jnp.maximum(jnp.sum(q * q, axis=-1, keepdims=True), _EPS2))
    psc = jax.lax.rsqrt(jnp.maximum(jnp.sum(p * p, axis=-1, keepdims=True), _EPS2))
    qn = (q * (qsc * jnp.float32(inv_temp))).astype(jnp.bfloat16)
    pn = (p * psc).astype(jnp.bfloat16)
    # positive logit from the bf16-rounded operands -> consistent with the diagonal
    # of the bf16 MXU matmul below.
    pos = jnp.sum(qn.astype(jnp.float32) * pn.astype(jnp.float32),
                  axis=-1, keepdims=True)
    logits = jax.lax.dot_general(
        qn, pn, dimension_numbers=(((1,), (1,)), ((), ())),
        preferred_element_type=jnp.float32)
    if n_pad > n_valid:
        col = jax.lax.broadcasted_iota(jnp.int32, logits.shape, 1)
        logits = jnp.where(col < n_valid, logits, _NEG_INF)
    m = jnp.max(logits, axis=-1, keepdims=True)
    lse = m + jnp.log(jnp.sum(jnp.exp(logits - m), axis=-1, keepdims=True))
    loss_ref[...] = lse - pos


def _run_fused_inbatch(q, p, inv_t, n_valid):
    b_pad, d_pad = q.shape
    kernel = functools.partial(_fused_inbatch_kernel, inv_temp=inv_t,
                               n_valid=n_valid, n_pad=b_pad)
    tile_b = 2 * b_pad * d_pad * 4 + b_pad * b_pad * 4
    return pl.pallas_call(
        kernel, grid=(1,),
        in_specs=[pl.BlockSpec((b_pad, d_pad), lambda i: (0, 0)),
                  pl.BlockSpec((b_pad, d_pad), lambda i: (0, 0))],
        out_specs=pl.BlockSpec((b_pad, 1), lambda i: (0, 0)),
        out_shape=jax.ShapeDtypeStruct((b_pad, 1), jnp.float32),
        compiler_params=_params(("arbitrary",), tile_b),
    )(q, p)


# ----------------------------------------------------------------------------
# Public entry points (reduction='mean')
# ----------------------------------------------------------------------------
def info_nce_unpaired(queries, positives, negatives, temperature=0.05,
                      tb_cap=_TB_CAP, tn_cap=_TN_CAP):
    B, D = queries.shape
    N = negatives.shape[0]
    d_pad = _round_up(D, _LANE)                              # zero-pad D: exact
    tb, b_pad = _tile_and_pad(B, tb_cap, align=16)
    tn, n_pad = _tile_and_pad(N, tn_cap, align=_LANE)        # columns lane-aligned
    inv_t = 1.0 / float(temperature)
    q = _pad2d(queries.astype(jnp.float32), b_pad, d_pad)
    p = _pad2d(positives.astype(jnp.float32), b_pad, d_pad)
    neg = _pad2d(negatives.astype(jnp.float32), n_pad, d_pad)

    if b_pad == tb:
        # Single query tile -> fused path, negatives read from HBM exactly once.
        per_ex = _run_fused_unpaired(q, p, neg, inv_t, N, tn)
    else:
        # Multi-pass over negatives -> normalize once to bf16, pre-transpose to
        # [D, N] (amortized over b_pad//tb re-streams), then online LSE.
        qn, pos = _prepare_q(q, p, inv_t, tb)
        if tn <= 512:
            tr = tn
        elif tn % 256 == 0:
            tr = 256
        else:
            tr = 128
        negT = jnp.transpose(_normalize_rows_bf16(neg, tr))
        per_ex = _run_stream(qn, pos, negT, seed_with_pos=True, n_valid=N,
                             tb=tb, tn=tn)
    return jnp.sum(per_ex[:B, 0]) / B           # mean over the real (unpadded) rows


def info_nce_in_batch(queries, positives, temperature=0.05,
                      tb_cap=_TB_CAP, tn_cap=_TN_CAP):
    B, D = queries.shape
    d_pad = _round_up(D, _LANE)
    tb, b_pad = _tile_and_pad(B, tb_cap, align=16)
    inv_t = 1.0 / float(temperature)
    q = _pad2d(queries.astype(jnp.float32), b_pad, d_pad)
    p = _pad2d(positives.astype(jnp.float32), b_pad, d_pad)

    if b_pad == tb:
        per_ex = _run_fused_inbatch(q, p, inv_t, B)
    else:
        qn, pn, pos = _prepare_qp(q, p, inv_t, tb)
        pnT = jnp.transpose(pn)
        # column tile: largest multiple of tb dividing b_pad that is lane-aligned
        # (or the full width) and within the column cap.
        n_i = b_pad // tb
        tnc = b_pad
        for c in range(1, n_i + 1):
            t = tb * c
            if n_i % c == 0 and t <= tn_cap and (t % _LANE == 0 or t == b_pad):
                tnc = t
        per_ex = _run_stream(qn, pos, pnT, seed_with_pos=False, n_valid=B,
                             tb=tb, tn=tnc)
    return jnp.sum(per_ex[:B, 0]) / B


# ----------------------------------------------------------------------------
# Deterministic stand-in for the SentenceTransformer model (plain-JAX glue):
# embedding lookup -> masked mean pooling -> dense projection.
# ----------------------------------------------------------------------------
def init_model_params(key, vocab_size, hidden, dim):
    k1, k2 = jax.random.split(key)
    return {
        "embedding": 0.02 * jax.random.normal(k1, (vocab_size, hidden), jnp.float32),
        "proj": jax.random.normal(k2, (hidden, dim), jnp.float32) / jnp.sqrt(hidden),
    }


def sentence_model(params, features):
    tok = params["embedding"][features["input_ids"]]                  # [B, L, H]
    mask = features["attention_mask"][..., None].astype(jnp.float32)  # [B, L, 1]
    pooled = jnp.sum(tok * mask, axis=1) / jnp.maximum(jnp.sum(mask, axis=1), 1.0)
    return {"sentence_embedding": pooled @ params["proj"]}            # [B, D]


# ----------------------------------------------------------------------------
# InfoNCELoss.forward equivalent (negative_mode='unpaired', reduction='mean')
# ----------------------------------------------------------------------------
def infonce_forward(params, sentence_features, labels=None,
                    temperature=0.05, reduction="mean", negative_mode="unpaired"):
    assert reduction == "mean" and negative_mode == "unpaired"
    reps = [sentence_model(params, f)["sentence_embedding"] for f in sentence_features]
    queries, positives = reps[0], reps[1]
    if len(reps) > 2:
        negatives = jnp.concatenate(reps[2:], axis=0)   # torch.cat(reps[2:])
        return info_nce_unpaired(queries, positives, negatives, temperature)
    return info_nce_in_batch(queries, positives, temperature)
    # TODO(synk): negative_mode='paired' (per-example negative stack / bmm) not implemented.


# ----------------------------------------------------------------------------
# Pure-JAX (f32) reference for correctness checking
# ----------------------------------------------------------------------------
def _info_nce_ref(q, p, neg, temperature):
    def norm(x):
        return x / jnp.maximum(jnp.linalg.norm(x, axis=-1, keepdims=True), _EPS)

    q, p = norm(q), norm(p)
    if neg is not None:
        neg = norm(neg)
        pos = jnp.sum(q * p, axis=-1, keepdims=True)
        negl = jnp.matmul(q, neg.T, precision=jax.lax.Precision.HIGHEST)
        logits = jnp.concatenate([pos, negl], axis=1) / temperature
        labels = jnp.zeros((q.shape[0],), jnp.int32)
    else:
        logits = jnp.matmul(q, p.T, precision=jax.lax.Precision.HIGHEST) / temperature
        labels = jnp.arange(q.shape[0])
    logp = jax.nn.log_softmax(logits, axis=-1)
    return -jnp.mean(jnp.take_along_axis(logp, labels[:, None], axis=1))


if __name__ == "__main__":
    B, L, VOCAB, HIDDEN, DIM = 8, 8, 100, 64, 128
    TEMP = 0.05

    key = jax.random.PRNGKey(0)
    kp, k1, k2, k3, k4, k5, k6, k7 = jax.random.split(key, 8)
    params = init_model_params(kp, VOCAB, HIDDEN, DIM)

    def make_features(k):
        ids = jax.random.randint(k, (B, L), 0, VOCAB)
        mask = jnp.ones((B, L), jnp.int32)
        return {"input_ids": ids, "attention_mask": mask}

    # queries, positives, and two negative sets (unpaired -> concatenated)
    sentence_features = [make_features(k1), make_features(k2),
                         make_features(k3), make_features(k4)]
    labels = jnp.zeros((B,), jnp.int32)  # unused by InfoNCE, mirrors the torch API

    # 1) unpaired explicit negatives -> fused single-tile streaming path
    loss = infonce_forward(params, sentence_features, labels, temperature=TEMP)
    loss = jax.block_until_ready(loss)
    reps = [sentence_model(params, f)["sentence_embedding"] for f in sentence_features]
    ref = _info_nce_ref(reps[0], reps[1], jnp.concatenate(reps[2:], axis=0), TEMP)
    assert jnp.allclose(loss, ref, rtol=2e-2, atol=2e-2), (loss, ref)

    # 2) no explicit negatives -> in-batch negatives, fused single-block path
    loss2 = infonce_forward(params, sentence_features[:2], labels, temperature=TEMP)
    loss2 = jax.block_until_ready(loss2)
    ref2 = _info_nce_ref(reps[0], reps[1], None, TEMP)
    assert jnp.allclose(loss2, ref2, rtol=2e-2, atol=2e-2), (loss2, ref2)

    # 3) + 4) exercise the multi-pass (prep + pre-transposed negatives + streaming
    #    online-LSE) paths with small tile caps so the 2-D grid, row/column padding
    #    and column masking all kick in.
    qs = jax.random.normal(k5, (44, DIM), jnp.float32)
    ps = jax.random.normal(k6, (44, DIM), jnp.float32)
    ns = jax.random.normal(k7, (200, DIM), jnp.float32)

    loss3 = jax.block_until_ready(
        info_nce_unpaired(qs, ps, ns, TEMP, tb_cap=16, tn_cap=128))
    ref3 = _info_nce_ref(qs, ps, ns, TEMP)
    assert jnp.allclose(loss3, ref3, rtol=3e-2, atol=3e-2), (loss3, ref3)

    loss4 = jax.block_until_ready(
        info_nce_in_batch(qs, ps, TEMP, tb_cap=16, tn_cap=128))
    ref4 = _info_nce_ref(qs, ps, None, TEMP)
    assert jnp.allclose(loss4, ref4, rtol=3e-2, atol=3e-2), (loss4, ref4)

    print("KERNEL_OK")
</pallas_src>

<mosaic_0001>
module attributes {stable_mosaic.version = 11 : i64} {
  func.func @_fused_unpaired_kernel(%arg0: i32, %arg1: memref<16x128xf32, #tpu.memory_space<vmem>>, %arg2: memref<16x128xf32, #tpu.memory_space<vmem>>, %arg3: memref<128x128xf32, #tpu.memory_space<vmem>>, %arg4: memref<16x1xf32, #tpu.memory_space<vmem>>, %arg5: memref<16x128xbf16, #tpu.memory_space<vmem>>, %arg6: memref<16x1xf32, #tpu.memory_space<vmem>>, %arg7: memref<16x1xf32, #tpu.memory_space<vmem>>, %arg8: memref<16x1xf32, #tpu.memory_space<vmem>>) attributes {dimension_semantics = [#tpu.dimension_semantics<arbitrary>], iteration_bounds = array<i64: 1>, scalar_prefetch = 0 : i64, scratch_operands = 4 : i64, tpu.core_type = #tpu.core_type<tc>, window_params = [{pipeline_mode = #tpu.pipeline_mode<synchronous>, transform_indices = @transform_0, window_bounds = array<i64: 16, 128>}, {pipeline_mode = #tpu.pipeline_mode<synchronous>, transform_indices = @transform_1, window_bounds = array<i64: 16, 128>}, {transform_indices = @transform_2, window_bounds = array<i64: 128, 128>}, {pipeline_mode = #tpu.pipeline_mode<synchronous>, transform_indices = @transform_3, window_bounds = array<i64: 16, 1>}]} {
    %c0_i32 = arith.constant 0 : i32
    %0 = arith.cmpi eq, %arg0, %c0_i32 : i32
    %1 = arith.extui %0 : i1 to i32
    %c0_i32_0 = arith.constant 0 : i32
    %2 = arith.cmpi ne, %1, %c0_i32_0 : i32
    scf.if %2 {
      %c0_19 = arith.constant 0 : index
      %c0_20 = arith.constant 0 : index
      %42 = vector.load %arg1[%c0_19, %c0_20] : memref<16x128xf32, #tpu.memory_space<vmem>>, vector<16x128xf32>
      %c0_21 = arith.constant 0 : index
      %c0_22 = arith.constant 0 : index
      %43 = vector.load %arg2[%c0_21, %c0_22] : memref<16x128xf32, #tpu.memory_space<vmem>>, vector<16x128xf32>
      %44 = arith.mulf %42, %42 : vector<16x128xf32>
      %cst_23 = arith.constant dense<0.000000e+00> : vector<16xf32>
      %45 = vector.multi_reduction <add>, %44, %cst_23 [1] : vector<16x128xf32> to vector<16xf32>
      %46 = vector.shape_cast %45 : vector<16xf32> to vector<16x1xf32>
      %cst_24 = arith.constant 1.000000e-24 : f32
      %47 = vector.broadcast %cst_24 : f32 to vector<16x1xf32>
      %48 = arith.maximumf %46, %47 : vector<16x1xf32>
      %49 = math.rsqrt %48 : vector<16x1xf32>
      %50 = arith.mulf %43, %43 : vector<16x128xf32>
      %cst_25 = arith.constant dense<0.000000e+00> : vector<16xf32>
      %51 = vector.multi_reduction <add>, %50, %cst_25 [1] : vector<16x128xf32> to vector<16xf32>
      %52 = vector.shape_cast %51 : vector<16xf32> to vector<16x1xf32>
      %cst_26 = arith.constant 1.000000e-24 : f32
      %53 = vector.broadcast %cst_26 : f32 to vector<16x1xf32>
      %54 = arith.maximumf %52, %53 : vector<16x1xf32>
      %55 = math.rsqrt %54 : vector<16x1xf32>
      %cst_27 = arith.constant 2.000000e+01 : f32
      %56 = vector.broadcast %cst_27 : f32 to vector<16x1xf32>
      %57 = arith.mulf %49, %56 : vector<16x1xf32>
      %58 = vector.broadcast %57 : vector<16x1xf32> to vector<16x128xf32>
      %59 = arith.mulf %42, %58 : vector<16x128xf32>
      %60 = vector.broadcast %55 : vector<16x1xf32> to vector<16x128xf32>
      %61 = arith.mulf %43, %60 : vector<16x128xf32>
      %62 = arith.mulf %59, %61 : vector<16x128xf32>
      %cst_28 = arith.constant dense<0.000000e+00> : vector<16xf32>
      %63 = vector.multi_reduction <add>, %62, %cst_28 [1] : vector<16x128xf32> to vector<16xf32>
      %64 = vector.shape_cast %63 : vector<16xf32> to vector<16x1xf32>
      %65 = arith.truncf %59 : vector<16x128xf32> to vector<16x128xbf16>
      %c0_29 = arith.constant 0 : index
      %c0_30 = arith.constant 0 : index
      %66 = vector.load %arg5[%c0_29, %c0_30] : memref<16x128xbf16, #tpu.memory_space<vmem>>, vector<16x128xbf16>
      tpu.vector_store %arg5[%c0_29, %c0_30], %65 {strides = array<i32>} : memref<16x128xbf16, #tpu.memory_space<vmem>>, vector<16x128xbf16>,
      %c0_31 = arith.constant 0 : index
      %c0_32 = arith.constant 0 : index
      %67 = vector.load %arg6[%c0_31, %c0_32] : memref<16x1xf32, #tpu.memory_space<vmem>>, vector<16x1xf32>
      tpu.vector_store %arg6[%c0_31, %c0_32], %64 {strides = array<i32>} : memref<16x1xf32, #tpu.memory_space<vmem>>, vector<16x1xf32>,
      %c0_33 = arith.constant 0 : index
      %c0_34 = arith.constant 0 : index
      %68 = vector.load %arg7[%c0_33, %c0_34] : memref<16x1xf32, #tpu.memory_space<vmem>>, vector<16x1xf32>
      tpu.vector_store %arg7[%c0_33, %c0_34], %64 {strides = array<i32>} : memref<16x1xf32, #tpu.memory_space<vmem>>, vector<16x1xf32>,
      %cst_35 = arith.constant 1.000000e+00 : f32
      %69 = vector.broadcast %cst_35 : f32 to vector<16x1xf32>
      %c0_36 = arith.constant 0 : index
      %c0_37 = arith.constant 0 : index
      %70 = vector.load %arg8[%c0_36, %c0_37] : memref<16x1xf32, #tpu.memory_space<vmem>>, vector<16x1xf32>
      tpu.vector_store %arg8[%c0_36, %c0_37], %69 {strides = array<i32>} : memref<16x1xf32, #tpu.memory_space<vmem>>, vector<16x1xf32>,
    } else {
    }
    %c0 = arith.constant 0 : index
    %c0_1 = arith.constant 0 : index
    %3 = vector.load %arg3[%c0, %c0_1] : memref<128x128xf32, #tpu.memory_space<vmem>>, vector<128x128xf32>
    %4 = arith.mulf %3, %3 : vector<128x128xf32>
    %cst = arith.constant dense<0.000000e+00> : vector<128xf32>
    %5 = vector.multi_reduction <add>, %4, %cst [1] : vector<128x128xf32> to vector<128xf32>
    %6 = vector.shape_cast %5 : vector<128xf32> to vector<128x1xf32>
    %cst_2 = arith.constant 1.000000e-24 : f32
    %7 = vector.broadcast %cst_2 : f32 to vector<128x1xf32>
    %8 = arith.maximumf %6, %7 : vector<128x1xf32>
    %9 = math.rsqrt %8 : vector<128x1xf32>
    %10 = vector.broadcast %9 : vector<128x1xf32> to vector<128x128xf32>
    %11 = arith.mulf %3, %10 : vector<128x128xf32>
    %12 = arith.truncf %11 : vector<128x128xf32> to vector<128x128xbf16>
    %c0_3 = arith.constant 0 : index
    %c0_4 = arith.constant 0 : index
    %13 = vector.load %arg5[%c0_3, %c0_4] : memref<16x128xbf16, #tpu.memory_space<vmem>>, vector<16x128xbf16>
    %cst_5 = arith.constant dense<0.000000e+00> : vector<16x128xf32>
    %14 = tpu.matmul %13, %12, %cst_5 {dimension_numbers = #tpu.dot_dimension_numbers<[1], [1], [0], [0], [0, 0, 1, 0], [], []>} : vector<16x128xbf16>, vector<128x128xbf16>, vector<16x128xf32> -> vector<16x128xf32>
    %15 = tpu.iota {dimensions = array<i32: 1>} : vector<16x128xi32>
    %c128_i32 = arith.constant 128 : i32
    %16 = arith.muli %arg0, %c128_i32 : i32
    %17 = vector.broadcast %16 : i32 to vector<16x128xi32>
    %18 = arith.addi %15, %17 : vector<16x128xi32>
    %c16_i32 = arith.constant 16 : i32
    %19 = vector.broadcast %c16_i32 : i32 to vector<16x128xi32>
    %20 = arith.cmpi slt, %18, %19 : vector<16x128xi32>
    %cst_6 = arith.constant -1.000000e+30 : f32
    %21 = vector.broadcast %cst_6 : f32 to vector<16x128xf32>
    %22 = arith.select %20, %14, %21 : vector<16x128xi1>, vector<16x128xf32>
    %c0_7 = arith.constant 0 : index
    %c0_8 = arith.constant 0 : index
    %23 = vector.load %arg7[%c0_7, %c0_8] : memref<16x1xf32, #tpu.memory_space<vmem>>, vector<16x1xf32>
    %cst_9 = arith.constant dense<0xFF800000> : vector<16xf32>
    %24 = vector.multi_reduction <maximumf>, %22, %cst_9 [1] : vector<16x128xf32> to vector<16xf32>
    %25 = vector.shape_cast %24 : vector<16xf32> to vector<16x1xf32>
    %26 = arith.maximumf %23, %25 : vector<16x1xf32>
    %c0_10 = arith.constant 0 : index
    %c0_11 = arith.constant 0 : index
    %27 = vector.load %arg8[%c0_10, %c0_11] : memref<16x1xf32, #tpu.memory_space<vmem>>, vector<16x1xf32>
    %28 = arith.subf %23, %26 : vector<16x1xf32>
    %29 = math.exp %28 : vector<16x1xf32>
    %30 = arith.mulf %27, %29 : vector<16x1xf32>
    %31 = vector.broadcast %26 : vector<16x1xf32> to vector<16x128xf32>
    %32 = arith.subf %22, %31 : vector<16x128xf32>
    %33 = math.exp %32 : vector<16x128xf32>
    %cst_12 = arith.constant dense<0.000000e+00> : vector<16xf32>
    %34 = vector.multi_reduction <add>, %33, %cst_12 [1] : vector<16x128xf32> to vector<16xf32>
    %35 = vector.shape_cast %34 : vector<16xf32> to vector<16x1xf32>
    %36 = arith.addf %30, %35 : vector<16x1xf32>
    %c0_13 = arith.constant 0 : index
    %c0_14 = arith.constant 0 : index
    %37 = vector.load %arg8[%c0_13, %c0_14] : memref<16x1xf32, #tpu.memory_space<vmem>>, vector<16x1xf32>
    tpu.vector_store %arg8[%c0_13, %c0_14], %36 {strides = array<i32>} : memref<16x1xf32, #tpu.memory_space<vmem>>, vector<16x1xf32>,
    %c0_15 = arith.constant 0 : index
    %c0_16 = arith.constant 0 : index
    %38 = vector.load %arg7[%c0_15, %c0_16] : memref<16x1xf32, #tpu.memory_space<vmem>>, vector<16x1xf32>
    tpu.vector_store %arg7[%c0_15, %c0_16], %26 {strides = array<i32>} : memref<16x1xf32, #tpu.memory_space<vmem>>, vector<16x1xf32>,
    %c0_i32_17 = arith.constant 0 : i32
    %39 = arith.cmpi eq, %arg0, %c0_i32_17 : i32
    %40 = arith.extui %39 : i1 to i32
    %c0_i32_18 = arith.constant 0 : i32
    %41 = arith.cmpi ne, %40, %c0_i32_18 : i32
    scf.if %41 {
      %c0_19 = arith.constant 0 : index
      %c0_20 = arith.constant 0 : index
      %42 = vector.load %arg7[%c0_19, %c0_20] : memref<16x1xf32, #tpu.memory_space<vmem>>, vector<16x1xf32>
      %c0_21 = arith.constant 0 : index
      %c0_22 = arith.constant 0 : index
      %43 = vector.load %arg8[%c0_21, %c0_22] : memref<16x1xf32, #tpu.memory_space<vmem>>, vector<16x1xf32>
      %44 = math.log %43 : vector<16x1xf32>
      %45 = arith.addf %42, %44 : vector<16x1xf32>
      %c0_23 = arith.constant 0 : index
      %c0_24 = arith.constant 0 : index
      %46 = vector.load %arg6[%c0_23, %c0_24] : memref<16x1xf32, #tpu.memory_space<vmem>>, vector<16x1xf32>
      %47 = arith.subf %45, %46 : vector<16x1xf32>
      %c0_25 = arith.constant 0 : index
      %c0_26 = arith.constant 0 : index
      %48 = vector.load %arg4[%c0_25, %c0_26] : memref<16x1xf32, #tpu.memory_space<vmem>>, vector<16x1xf32>
      tpu.vector_store %arg4[%c0_25, %c0_26], %47 {strides = array<i32>} : memref<16x1xf32, #tpu.memory_space<vmem>>, vector<16x1xf32>,
    } else {
    }
    return
  }
  func.func @transform_0(%arg0: i32) -> (i32, i32) {
    %c0_i32 = arith.constant 0 : i32
    %c0_i32_0 = arith.constant 0 : i32
    %c0_i32_1 = arith.constant 0 : i32
    return %c0_i32, %c0_i32_0 : i32, i32
  }
  func.func @transform_1(%arg0: i32) -> (i32, i32) {
    %c0_i32 = arith.constant 0 : i32
    %c0_i32_0 = arith.constant 0 : i32
    %c0_i32_1 = arith.constant 0 : i32
    return %c0_i32, %c0_i32_0 : i32, i32
  }
  func.func @transform_2(%arg0: i32) -> (i32, i32) {
    %c0_i32 = arith.constant 0 : i32
    %c0_i32_0 = arith.constant 0 : i32
    return %arg0, %c0_i32 : i32, i32
  }
  func.func @transform_3(%arg0: i32) -> (i32, i32) {
    %c0_i32 = arith.constant 0 : i32
    %c0_i32_0 = arith.constant 0 : i32
    %c0_i32_1 = arith.constant 0 : i32
    return %c0_i32, %c0_i32_0 : i32, i32
  }
}

</mosaic_0001>

<llo_original>
// kernel: tpu_custom_call.1
$region0: #{tpu_custom_call.1}
  #allocation0 [shape = 'u32[]', space=smem, size = 0x4, offset = 0x4, fixed_abs, tag = 'smem constant byte address 0x4 - core index']
  #allocation1 [shape = 'u32[144,128]{1,0:T(1,128)}', space=vmem, size = 0x12000, scoped, tag = 'internal scratch']
  #allocation2 [shape = 'bf16[16,128]{1,0:T(16,128)(2,1)}', space=vmem, size = 0x1000, scoped, tag = 'scratch operand']
  #allocation3 [shape = 'f32[16,1]{1,0:T(8,128)}', space=vmem, size = 0x2000, scoped, tag = 'scratch operand']
  #allocation4 [shape = 'f32[16,1]{1,0:T(8,128)}', space=vmem, size = 0x2000, scoped, tag = 'scratch operand']
  #allocation5 [shape = 'f32[16,1]{1,0:T(8,128)}', space=vmem, size = 0x2000, scoped, tag = 'scratch operand']
  %s0 = inlined_call_operand.hbm [shape: f32[16,128], index: 0, kind: input, shape index: {}]
  %s1 = inlined_call_operand.hbm [shape: f32[16,128], index: 1, kind: input, shape index: {}]
  %s2 = inlined_call_operand.hbm [shape: f32[128,128], index: 2, kind: input, shape index: {}]
  %s3 = inlined_call_operand.vmem [shape: f32[16,1], index: 3, kind: output, shape index: {}]
  %s4 = sld [smem:[#allocation0]]
  $region42: #{tpu_custom_call.1} parent=0
    _
  %s6 = ssub.s32 1, %s4
  %s7 = scalar_select 0, %s6, %s4
  $region1: #{tpu_custom_call.1} parent=0
    #allocation6 [shape = 'u8[8192]{0}', space=vmem, size = 0x2000, scoped, tag = 'input window, operand 0, single buffered']
    #allocation7 [shape = 's32[1]{0}', space=sflag, size = 0x4, scoped, tag = 'scoped memory for tpu_custom_call.1']
    #allocation8 [shape = 'u8[8192]{0}', space=vmem, size = 0x2000, scoped, tag = 'input window, operand 1, single buffered']
    #allocation9 [shape = 's32[1]{0}', space=sflag, size = 0x4, scoped, tag = 'scoped memory for tpu_custom_call.1']
    #allocation10 [shape = 'u8[65536]{0}', space=vmem, size = 0x10000, scoped, tag = 'input window, operand 2, single buffered']
    %8 = vsyncpa [#allocation7], 0
    %9 = vsyncpa [#allocation9], 0
    // Predicated region
    $region2: #{tpu_custom_call.1} parent=1 // pred_check
      _
    $region3: #{tpu_custom_call.1} parent=1 // pred_check_branch
      %11 = sbr.rel (0) target = $region5
    $region4: #{tpu_custom_call.1} parent=1 // pred_region
      %s13 = ssub.s32 256, 256
      %14 = vsyncadd [#allocation7], %s13
      %s15 = sshll.u32 [#allocation6], 4
      %s16 = int_to_ptr.vmem [resolvable:$true] %s15
      %21 = dma.hbm_to_vmem [thread:$0]  %s0, 256, %s16, [#allocation7], 128, 128, 8
    $region5: #{tpu_custom_call.1} parent=1 // pred_fallthru
      _
    // Predicated region
    $region6: #{tpu_custom_call.1} parent=1 // pred_check
      _
    $region7: #{tpu_custom_call.1} parent=1 // pred_check_branch
      %23 = sbr.rel (0) target = $region9
    $region8: #{tpu_custom_call.1} parent=1 // pred_region
      %s25 = ssub.s32 256, 256
      %26 = vsyncadd [#allocation9], %s25
      %s27 = sshll.u32 [#allocation8], 4
      %s28 = int_to_ptr.vmem [resolvable:$true] %s27
      %33 = dma.hbm_to_vmem [thread:$0]  %s1, 256, %s28, [#allocation9], 128, 128, 8
    $region9: #{tpu_custom_call.1} parent=1 // pred_fallthru
      _
    // Predicated region
    $region10: #{tpu_custom_call.1} parent=1 // pred_check
      _
    $region11: #{tpu_custom_call.1} parent=1 // pred_check_branch
      %35 = sbr.rel (0) target = $region13
    $region12: #{tpu_custom_call.1} parent=1 // pred_region
      %s37 = ssub.s32 2048, 2048
      %38 = vsyncadd [#allocation9], %s37
      %s39 = sshll.u32 [#allocation10], 4
      %s40 = int_to_ptr.vmem [resolvable:$true] %s39
      %45 = dma.hbm_to_vmem [thread:$0]  %s2, 2048, %s40, [#allocation9], 128, 128, 8
    $region13: #{tpu_custom_call.1} parent=1 // pred_fallthru
      _
    // Predicated region
    $region14: #{tpu_custom_call.1} parent=1 // pred_check
      _
    $region15: #{tpu_custom_call.1} parent=1 // pred_check_branch
      %47 = sbr.rel (0) target = $region17
    $region16: #{tpu_custom_call.1} parent=1 // pred_region
      %48 = dma.done [#allocation7], 256
    $region17: #{tpu_custom_call.1} parent=1 // pred_fallthru
      _
    // Predicated region
    $region18: #{tpu_custom_call.1} parent=1 // pred_check
      _
    $region19: #{tpu_custom_call.1} parent=1 // pred_check_branch
      %50 = sbr.rel (0) target = $region21
    $region20: #{tpu_custom_call.1} parent=1 // pred_region
      %51 = dma.done [#allocation9], 256
    $region21: #{tpu_custom_call.1} parent=1 // pred_fallthru
      _
    // Predicated region
    $region22: #{tpu_custom_call.1} parent=1 // pred_check
      _
    $region23: #{tpu_custom_call.1} parent=1 // pred_check_branch
      %53 = sbr.rel (0) target = $region25
    $region24: #{tpu_custom_call.1} parent=1 // pred_region
      %54 = dma.done [#allocation9], 2048
    $region25: #{tpu_custom_call.1} parent=1 // pred_fallthru
      _
    %p56 = scmp.eq.s32.totalorder 0, 0
    // Predicated region
    $region26: #{tpu_custom_call.1} parent=1 // pred_check
      %p57 = pneg %p56
    $region27: #{tpu_custom_call.1} parent=1 // pred_check_branch
      %59 = sbr.rel (%p57) target = $region29
    $region28: #{tpu_custom_call.1} parent=1 // pred_region
      %v60 = vld [vmem:[#allocation6] sm:$0xff]
      %v61 = vld [vmem:[#allocation6 + $0x8] sm:$0xff]
      %v62 = vld [vmem:[#allocation8] sm:$0xff]
      %v63 = vld [vmem:[#allocation8 + $0x8] sm:$0xff]
      %v64 = vmul.f32 %v60, %v60
      %v65 = vmul.f32 %v61, %v61
      %66 = vadd.xlane.f32.xlu0 %v64
      %v67 = vpop.xlane.xlu0 %66
      %68 = vadd.xlane.f32.xlu0 %v65
      %v69 = vpop.xlane.xlu0 %68
      %v70 = vmax.f32 %v67, 1e-24
      %v71 = vmax.f32 %v69, 1e-24
      %v72 = vrsqrt.pop %v70
      %v73 = vrsqrt.pop %v71
      %v74 = vmul.f32 %v62, %v62
      %v75 = vmul.f32 %v63, %v63
      %76 = vadd.xlane.f32.xlu0 %v74
      %v77 = vpop.xlane.xlu0 %76
      %78 = vadd.xlane.f32.xlu0 %v75
      %v79 = vpop.xlane.xlu0 %78
      %v80 = vmax.f32 %v77, 1e-24
      %v81 = vmax.f32 %v79, 1e-24
      %v82 = vrsqrt.pop %v80
      %v83 = vrsqrt.pop %v81
      %v84 = vmul.f32 %v72, 20.0
      %v85 = vmul.f32 %v73, 20.0
      %v86 = vmul.f32 %v60, %v84
      %v87 = vmul.f32 %v61, %v85
      %v88 = vmul.f32 %v62, %v82
      %v89 = vmul.f32 %v63, %v83
      %v90 = vmul.f32 %v86, %v88
      %v91 = vmul.f32 %v87, %v89
      %92 = vadd.xlane.f32.xlu0 %v90
      %v93 = vpop.xlane.xlu0 %92
      %94 = vadd.xlane.f32.xlu0 %v91
      %v95 = vpop.xlane.xlu0 %94
      %v96 = vpack.c.bf16 %v87, %v86
      %97 = vst [vmem:[#allocation2] sm:$0xff] %v96
      %vm98 = vcmask 7168
      %99 = vst.msk [vmem:[#allocation3] sm:$0xff] %vm98, %v93
      %100 = vst.msk [vmem:[#allocation3 + $0x8] sm:$0xff] %vm98, %v95
      %101 = vst.msk [vmem:[#allocation4] sm:$0xff] %vm98, %v93
      %102 = vst.msk [vmem:[#allocation4 + $0x8] sm:$0xff] %vm98, %v95
      %103 = vst.msk [vmem:[#allocation5] sm:$0xff] %vm98, 1.0
      %104 = vst.msk [vmem:[#allocation5 + $0x8] sm:$0xff] %vm98, 1.0
    $region29: #{tpu_custom_call.1} parent=1 // pred_fallthru
      _
    %v105 = vld [vmem:[#allocation10] sm:$0xff]
    %v106 = vld [vmem:[#allocation10 + $0x8] sm:$0xff]
    %v107 = vld [vmem:[#allocation10 + $0x10] sm:$0xff]
    %v108 = vld [vmem:[#allocation10 + $0x18] sm:$0xff]
    %v109 = vld [vmem:[#allocation10 + $0x20] sm:$0xff]
    %v110 = vld [vmem:[#allocation10 + $0x28] sm:$0xff]
    %v111 = vld [vmem:[#allocation10 + $0x30] sm:$0xff]
    %v112 = vld [vmem:[#allocation10 + $0x38] sm:$0xff]
    %v113 = vld [vmem:[#allocation10 + $0x40] sm:$0xff]
    %v114 = vld [vmem:[#allocation10 + $0x48] sm:$0xff]
    %v115 = vld [vmem:[#allocation10 + $0x50] sm:$0xff]
    %v116 = vld [vmem:[#allocation10 + $0x58] sm:$0xff]
    %v117 = vld [vmem:[#allocation10 + $0x60] sm:$0xff]
    %v118 = vld [vmem:[#allocation10 + $0x68] sm:$0xff]
    %v119 = vld [vmem:[#allocation10 + $0x70] sm:$0xff]
    %v120 = vld [vmem:[#allocation10 + $0x78] sm:$0xff]
    %v121 = vmul.f32 %v105, %v105
    %v122 = vmul.f32 %v106, %v106
    %v123 = vmul.f32 %v107, %v107
    %v124 = vmul.f32 %v108, %v108
    %v125 = vmul.f32 %v109, %v109
    %v126 = vmul.f32 %v110, %v110
    %v127 = vmul.f32 %v111, %v111
    %v128 = vmul.f32 %v112, %v112
    %v129 = vmul.f32 %v113, %v113
    %v130 = vmul.f32 %v114, %v114
    %v131 = vmul.f32 %v115, %v115
    %v132 = vmul.f32 %v116, %v116
    %v133 = vmul.f32 %v117, %v117
    %v134 = vmul.f32 %v118, %v118
    %v135 = vmul.f32 %v119, %v119
    %v136 = vmul.f32 %v120, %v120
    %137 = vadd.xlane.f32.xlu0 %v121
    %v138 = vpop.xlane.xlu0 %137
    %139 = vadd.xlane.f32.xlu0 %v122
    %v140 = vpop.xlane.xlu0 %139
    %141 = vadd.xlane.f32.xlu0 %v123
    %v142 = vpop.xlane.xlu0 %141
    %143 = vadd.xlane.f32.xlu0 %v124
    %v144 = vpop.xlane.xlu0 %143
    %145 = vadd.xlane.f32.xlu0 %v125
    %v146 = vpop.xlane.xlu0 %145
    %147 = vadd.xlane.f32.xlu0 %v126
    %v148 = vpop.xlane.xlu0 %147
    %149 = vadd.xlane.f32.xlu0 %v127
    %v150 = vpop.xlane.xlu0 %149
    %151 = vadd.xlane.f32.xlu0 %v128
    %v152 = vpop.xlane.xlu0 %151
    %153 = vadd.xlane.f32.xlu0 %v129
    %v154 = vpop.xlane.xlu0 %153
    %155 = vadd.xlane.f32.xlu0 %v130
    %v156 = vpop.xlane.xlu0 %155
    %157 = vadd.xlane.f32.xlu0 %v131
    %v158 = vpop.xlane.xlu0 %157
    %159 = vadd.xlane.f32.xlu0 %v132
    %v160 = vpop.xlane.xlu0 %159
    %161 = vadd.xlane.f32.xlu0 %v133
    %v162 = vpop.xlane.xlu0 %161
    %163 = vadd.xlane.f32.xlu0 %v134
    %v164 = vpop.xlane.xlu0 %163
    %165 = vadd.xlane.f32.xlu0 %v135
    %v166 = vpop.xlane.xlu0 %165
    %167 = vadd.xlane.f32.xlu0 %v136
    %v168 = vpop.xlane.xlu0 %167
    %v169 = vmax.f32 %v138, 1e-24
    %v170 = vmax.f32 %v140, 1e-24
    %v171 = vmax.f32 %v142, 1e-24
    %v172 = vmax.f32 %v144, 1e-24
    %v173 = vmax.f32 %v146, 1e-24
    %v174 = vmax.f32 %v148, 1e-24
    %v175 = vmax.f32 %v150, 1e-24
    %v176 = vmax.f32 %v152, 1e-24
    %v177 = vmax.f32 %v154, 1e-24
    %v178 = vmax.f32 %v156, 1e-24
    %v179 = vmax.f32 %v158, 1e-24
    %v180 = vmax.f32 %v160, 1e-24
    %v181 = vmax.f32 %v162, 1e-24
    %v182 = vmax.f32 %v164, 1e-24
    %v183 = vmax.f32 %v166, 1e-24
    %v184 = vmax.f32 %v168, 1e-24
    %v185 = vrsqrt.pop %v169
    %v186 = vrsqrt.pop %v170
    %v187 = vrsqrt.pop %v171
    %v188 = vrsqrt.pop %v172
    %v189 = vrsqrt.pop %v173
    %v190 = vrsqrt.pop %v174
    %v191 = vrsqrt.pop %v175
    %v192 = vrsqrt.pop %v176
    %v193 = vrsqrt.pop %v177
    %v194 = vrsqrt.pop %v178
    %v195 = vrsqrt.pop %v179
    %v196 = vrsqrt.pop %v180
    %v197 = vrsqrt.pop %v181
    %v198 = vrsqrt.pop %v182
    %v199 = vrsqrt.pop %v183
    %v200 = vrsqrt.pop %v184
    %v201 = vmul.f32 %v105, %v185
    %v202 = vmul.f32 %v106, %v186
    %v203 = vmul.f32 %v107, %v187
    %v204 = vmul.f32 %v108, %v188
    %v205 = vmul.f32 %v109, %v189
    %v206 = vmul.f32 %v110, %v190
    %v207 = vmul.f32 %v111, %v191
    %v208 = vmul.f32 %v112, %v192
    %v209 = vmul.f32 %v113, %v193
    %v210 = vmul.f32 %v114, %v194
    %v211 = vmul.f32 %v115, %v195
    %v212 = vmul.f32 %v116, %v196
    %v213 = vmul.f32 %v117, %v197
    %v214 = vmul.f32 %v118, %v198
    %v215 = vmul.f32 %v119, %v199
    %v216 = vmul.f32 %v120, %v200
    %v217 = vpack.c.bf16 %v202, %v201
    %v218 = vpack.c.bf16 %v204, %v203
    %v219 = vpack.c.bf16 %v206, %v205
    %v220 = vpack.c.bf16 %v208, %v207
    %v221 = vpack.c.bf16 %v210, %v209
    %v222 = vpack.c.bf16 %v212, %v211
    %v223 = vpack.c.bf16 %v214, %v213
    %v224 = vpack.c.bf16 %v216, %v215
    %v225 = vld [vmem:[#allocation2] sm:$0xff]
    %226 = vmatprep.subr.bf16.mxu0 0
    %227 = vmatpush1.bf16.xpose.msra.mxu0 %v217
    %228 = vmatprep.subr.bf16.mxu0 0
    %229 = vmatpush1.bf16.xpose.msra.mxu0 %v218
    %230 = vmatprep.subr.bf16.mxu0 0
    %231 = vmatpush1.bf16.xpose.msra.mxu0 %v219
    %232 = vmatprep.subr.bf16.mxu0 0
    %233 = vmatpush1.bf16.xpose.msra.mxu0 %v220
    %234 = vmatprep.subr.bf16.mxu0 0
    %235 = vmatpush1.bf16.xpose.msra.mxu0 %v221
    %236 = vmatprep.subr.bf16.mxu0 0
    %237 = vmatpush1.bf16.xpose.msra.mxu0 %v222
    %238 = vmatprep.subr.bf16.mxu0 0
    %239 = vmatpush1.bf16.xpose.msra.mxu0 %v223
    %240 = vmatprep.subr.bf16.mxu0 0
    %241 = vmatpush1.bf16.xpose.msra.mxu0 %v224
    %242 = vmatprep.subr.bf16.mxu0 0
    %243 = vmatpush1.bf16.xpose.msra.mxu0 0
    %244 = vmatprep.subr.bf16.mxu0 0
    %245 = vmatpush1.bf16.xpose.msra.mxu0 0
    %246 = vmatprep.subr.bf16.mxu0 0
    %247 = vmatpush1.bf16.xpose.msra.mxu0 0
    %248 = vmatprep.subr.bf16.mxu0 0
    %249 = vmatpush1.bf16.xpose.msra.mxu0 0
    %250 = vmatprep.subr.bf16.mxu0 0
    %251 = vmatpush1.bf16.xpose.msra.mxu0 0
    %252 = vmatprep.subr.bf16.mxu0 0
    %253 = vmatpush1.bf16.xpose.msra.mxu0 0
    %254 = vmatprep.subr.bf16.mxu0 0
    %255 = vmatpush1.bf16.xpose.msra.mxu0 0
    %256 = vmatprep.subr.bf16.mxu0 0
    %257 = vmatpush1.bf16.xpose.msra.mxu0 0
    %258 = vmatprep.mubr.bf16.mxu0 0
    %259 = vmatmul.mubr.bf16.gmra.mrb[0].mxu0 %v225
    %v260 = vpop.f32.mrb[0].mxu0
    %v261 = vadd.f32 0.0, %v260
    %v262 = vpop.f32.mrb[0].mxu0
    %v263 = vpop.f32.mrb[0].mxu0
    %v264 = vadd.f32 0.0, %v263
    %v265 = vpop.f32.mrb[0].mxu0
    %266 = vdwg.mxu0
    %v267 = vlaneseq
    %v268 = vand.u32 %v267, 127
    %s269 = smul.u32 0, 128
    %v270 = vstv %s269
    %v271 = vadd.s32 %v268, %v270
    %vm272 = vcmp.lt.s32.totalorder %v271, 16
    %v273 = vsel %vm272, %v261, -1e+30
    %v274 = vsel %vm272, %v264, -1e+30
    %v275 = vld [vmem:[#allocation4] sm:$0xff]
    %v276 = vld [vmem:[#allocation4 + $0x8] sm:$0xff]
    %277 = vmax.xlane.f32.xlu0 %v273
    %v278 = vpop.xlane.xlu0 %277
    %279 = vmax.xlane.f32.xlu0 %v274
    %v280 = vpop.xlane.xlu0 %279
    %v281 = vmax.f32 %v275, %v278
    %v282 = vmax.f32 %v276, %v280
    %v283 = vld [vmem:[#allocation5] sm:$0xff]
    %v284 = vld [vmem:[#allocation5 + $0x8] sm:$0xff]
    %v285 = vsub.f32 %v275, %v281
    %v286 = vsub.f32 %v276, %v282
    %v287 = vmul.f32 %v285, 1.442695
    %v288 = vpow.pop %v287
    %v289 = vmul.f32 %v286, 1.442695
    %v290 = vpow.pop %v289
    %v291 = vmul.f32 %v283, %v288
    %v292 = vmul.f32 %v284, %v290
    %294 = vset.pattern.permute.xlu0 0
    %295 = vperm.xlu0 %294, %v281
    %v296 = vpop.permute.xlu0 %295
    %299 = vset.pattern.permute.xlu0 0
    %300 = vperm.xlu0 %299, %v282
    %v301 = vpop.permute.xlu0 %300
    %v303 = vsub.f32 %v273, %v296
    %v304 = vsub.f32 %v274, %v301
    %v305 = vmul.f32 %v303, 1.442695
    %v306 = vpow.pop %v305
    %v307 = vmul.f32 %v304, 1.442695
    %v308 = vpow.pop %v307
    %309 = vadd.xlane.f32.xlu0 %v306
    %v310 = vpop.xlane.xlu0 %309
    %311 = vadd.xlane.f32.xlu0 %v308
    %v312 = vpop.xlane.xlu0 %311
    %v313 = vadd.f32 %v291, %v310
    %v314 = vadd.f32 %v292, %v312
    %vm315 = vcmask 7168
    %316 = vst.msk [vmem:[#allocation5] sm:$0xff] %vm315, %v313
    %317 = vst.msk [vmem:[#allocation5 + $0x8] sm:$0xff] %vm315, %v314
    %318 = vst.msk [vmem:[#allocation4] sm:$0xff] %vm315, %v281
    %319 = vst.msk [vmem:[#allocation4 + $0x8] sm:$0xff] %vm315, %v282
    // Predicated region
    $region30: #{tpu_custom_call.1} parent=1 // pred_check
      %p320 = pneg %p56
    $region31: #{tpu_custom_call.1} parent=1 // pred_check_branch
      %322 = sbr.rel (%p320) target = $region33
    $region32: #{tpu_custom_call.1} parent=1 // pred_region
      %v323 = vld [vmem:[#allocation4] sm:$0xff]
      %v324 = vld [vmem:[#allocation4 + $0x8] sm:$0xff]
      %v325 = vld [vmem:[#allocation5] sm:$0xff]
      %v326 = vld [vmem:[#allocation5 + $0x8] sm:$0xff]
      %v327 = vlog2.pop %v325
      %v328 = vmul.f32 %v327, 0.6931472
      %v329 = vlog2.pop %v326
      %v330 = vmul.f32 %v329, 0.6931472
      %v331 = vadd.f32 %v323, %v328
      %v332 = vadd.f32 %v324, %v330
      %v333 = vld [vmem:[#allocation3] sm:$0xff]
      %v334 = vld [vmem:[#allocation3 + $0x8] sm:$0xff]
      %v335 = vsub.f32 %v331, %v333
      %v336 = vsub.f32 %v332, %v334
      %337 = vst.msk [vmem:[%s3] sm:$0xff] %vm315, %v335
      %338 = vst.msk [vmem:[%s3 + $0x8] sm:$0xff] %vm315, %v336
    $region33: #{tpu_custom_call.1} parent=1 // pred_fallthru
      _
    // Predicated region
    $region34: #{tpu_custom_call.1} parent=1 // pred_check
      _
    $region35: #{tpu_custom_call.1} parent=1 // pred_check_branch
      %340 = sbr.rel (0) target = $region37
    $region36: #{tpu_custom_call.1} parent=1 // pred_region
      _
    $region37: #{tpu_custom_call.1} parent=1 // pred_fallthru
      _
    // Predicated region
    $region38: #{tpu_custom_call.1} parent=1 // pred_check
      _
    $region39: #{tpu_custom_call.1} parent=1 // pred_check_branch
      %342 = sbr.rel (0) target = $region41
    $region40: #{tpu_custom_call.1} parent=1 // pred_region
      _
    $region41: #{tpu_custom_call.1} parent=1 // pred_fallthru
      _
    %343 = vsyncpa [#allocation7], 1
    %344 = vsyncpa [#allocation9], 1

</llo_original>
